<compile_context>
chip_gen: v5e
topology: v5e:2x2
jax: 0.10.0
libtpu: 0.0.40
codegen_flags: <defaults>
</compile_context>

<pallas_src>
import functools

import jax
import jax.numpy as jnp
from jax import lax
from jax.experimental import pallas as pl
from jax.experimental.pallas import tpu as pltpu

_NT = (((1,), (1,)), ((), ()))   # contract last dims of both operands (A @ B^T)


def _round_up(x, m):
    return (x + m - 1) // m * m


# ------------------------------ fused kernel --------------------------------

def _make_kernel(N, Din, C, L, DC, ENC_W, E_PAD):
    """C = hidden_channels, L = latent_dim, DC = decoder_channels."""
    f32 = jnp.float32
    bf16 = jnp.bfloat16

    def kernel(maskb_ref, adj_ref, x_ref, eps_ref, eidx_ref,
               wproj_ref, wgcn_ref, wl_ref, vec_ref,
               enc_ref, recon_ref):
        # -------- packed small parameters (one VMEM load, static slices) --------
        vecs = vec_ref[...]
        gat_b = vecs[0:1, :C]
        bn1_s = vecs[1:2, :C]
        bn1_b = vecs[2:3, :C]
        bgcn = vecs[3:4, :L]
        bn2_s = vecs[4:5, :L]
        bn2_b = vecs[5:6, :L]
        bml = vecs[6:7, :ENC_W]          # [b_mu | b_logvar | 0-pad]
        bres = vecs[7:8, :L]
        db1 = vecs[8:9, :DC]
        w2row = vecs[9:10, :DC]          # decoder final Linear weight (1, DC)
        db2 = vecs[10:11, 0:1]
        ws2 = vecs[11:13, :Din]          # per-head a_src^T W_h  (2, Din)

        x = x_ref[...]                                            # (N, Din) f32

        # ---------------- GAT (2 heads, mean) + ReLU + BN1 ----------------
        wp = wproj_ref[...]                                       # (Din, 2C+2)
        # hoisted once: both heads' node values AND dst scores in one MXU pass
        xh = jnp.dot(x, wp, preferred_element_type=f32)           # (N, 2C+2)
        # source scores for all nodes, lane-major (2, N)
        sT = lax.dot_general(ws2, x, _NT, preferred_element_type=f32)
        d = xh[:, 2 * C:2 * C + 2]                                # dst scores (N, 2)
        bias = maskb_ref[...].astype(f32)      # additive mask (0 on edges, -1e30 off)

        def head_probs(h):
            e = d[:, h:h + 1] + sT[h:h + 1, :]                    # (N, N)
            e = jnp.where(e > 0, e, 0.2 * e)                      # LeakyReLU(0.2)
            logits = e + bias
            m = jnp.max(logits, axis=1, keepdims=True)
            p = jnp.exp(logits - m)
            inv = pl.reciprocal(jnp.sum(p, axis=1, keepdims=True), approx=True)
            return p * inv

        # fuse both heads' P@V into a single MXU pass (K = 2N)
        p_cat = jnp.concatenate([head_probs(0), head_probs(1)], axis=1)   # (N, 2N)
        v_cat = jnp.concatenate([xh[:, :C], xh[:, C:2 * C]], axis=0)      # (2N, C)
        hb = 0.5 * jnp.dot(p_cat.astype(bf16), v_cat.astype(bf16),
                           preferred_element_type=f32) + gat_b    # mean over heads
        hb = jnp.maximum(hb, 0.0)                                 # F.relu
        hb = hb * bn1_s + bn1_b                                   # BN1 (eval); dropout=id

        # ---------------- GCN + ReLU + BN2 ----------------
        hw = jnp.dot(hb, wgcn_ref[...], preferred_element_type=f32)       # (N, L)
        h2 = jnp.dot(adj_ref[...], hw.astype(bf16),
                     preferred_element_type=f32) + bgcn           # D^-1/2(A+I)D^-1/2 @ hW
        h2 = jnp.maximum(h2, 0.0)                                 # F.relu
        h2 = h2 * bn2_s + bn2_b                                   # BN2 (eval); dropout=id

        # ---------------- mu / logvar (lane-padded to ENC_W, dense store) ----------------
        wl = wl_ref[...]
        ml = jnp.dot(h2, wl[:, :ENC_W], preferred_element_type=f32) + bml  # (N, ENC_W)
        enc_ref[...] = ml

        # ---------------- reparameterize + residual + edge decoder ----------------
        mu = ml[:, :L]
        lv = ml[:, L:2 * L]
        z = mu + eps_ref[...] * jnp.exp(0.5 * lv)                 # (N, L)
        r = jnp.dot(z, wl[:, ENC_W:ENC_W + L], preferred_element_type=f32) + bres
        pz = jnp.dot(r, wl[:, ENC_W + L:], preferred_element_type=f32)     # (N, 2*DC)

        # edge gather via in-kernel one-hot (no (E, 2N) HBM input)
        eidx = eidx_ref[...]                                      # (E_PAD, 2) int32
        iota = lax.broadcasted_iota(jnp.int32, (E_PAD, N), 1)
        oh_r = (iota == eidx[:, 0:1]).astype(f32)                 # (E_PAD, N)
        oh_c = (iota == eidx[:, 1:2]).astype(f32)
        hd = (jnp.dot(oh_r, pz[:, :DC], preferred_element_type=f32)
              + jnp.dot(oh_c, pz[:, DC:], preferred_element_type=f32) + db1)
        hd = jnp.maximum(hd, 0.0)                                 # ReLU; dropout = id
        recon = lax.dot_general(w2row, hd, _NT,
                                preferred_element_type=f32) + db2          # (1, E_PAD)
        recon_ref[...] = jnp.broadcast_to(recon, (8, E_PAD))      # dense (8, E_PAD) store

    return kernel


def run_fused(maskb, adj, x, eps, eidx, params):
    N, Din = x.shape
    L = eps.shape[1]
    C = params["wgcnT"].shape[0]
    ENC_W = _round_up(2 * L, 128)
    DC = (params["wL"].shape[1] - ENC_W - L) // 2
    E_PAD = eidx.shape[0]

    kernel = _make_kernel(N, Din, C, L, DC, ENC_W, E_PAD)

    def full(arr):
        return pl.BlockSpec(arr.shape, lambda i: (0,) * arr.ndim)

    inputs = (maskb, adj, x, eps, eidx,
              params["wproj"], params["wgcnT"], params["wL"], params["vecs"])

    return pl.pallas_call(
        kernel,
        out_shape=(jax.ShapeDtypeStruct((N, ENC_W), jnp.float32),
                   jax.ShapeDtypeStruct((8, E_PAD), jnp.float32)),
        grid=(1,),                                   # single program: no pipeline overhead
        in_specs=[full(a) for a in inputs],
        out_specs=(pl.BlockSpec((N, ENC_W), lambda i: (0, 0)),
                   pl.BlockSpec((8, E_PAD), lambda i: (0, 0))),
        compiler_params=pltpu.CompilerParams(dimension_semantics=("arbitrary",)),
    )(*inputs)


# ------------------------------- forward ------------------------------------

@functools.partial(jax.jit, static_argnames=("num_nodes",))
def gnn_vae_forward(params, x, edge_index, eps, num_nodes):
    N = num_nodes
    E = edge_index.shape[1]
    L = eps.shape[1]
    row, col = edge_index[0], edge_index[1]           # edge k: row[k] -> col[k]

    # dense adjacency with self loops; A[i, j] = 1 iff j -> i (or i == j)
    A = jnp.zeros((N, N), jnp.float32).at[col, row].set(1.0)
    A = jnp.maximum(A, jnp.eye(N, dtype=jnp.float32))
    deg = jnp.sum(A, axis=1)
    dinv = jax.lax.rsqrt(deg)
    adj = (A * dinv[:, None] * dinv[None, :]).astype(jnp.bfloat16)   # GCN-normalized (bf16)
    maskb = jnp.where(A > 0, 0.0, -1e30).astype(jnp.bfloat16)        # attention mask bias

    # edge endpoints, lane-padded to a multiple of 128 (dummy (0,0) edges sliced off)
    E_PAD = _round_up(E, 128)
    pad = E_PAD - E
    row_p = jnp.concatenate([row, jnp.zeros((pad,), row.dtype)])
    col_p = jnp.concatenate([col, jnp.zeros((pad,), col.dtype)])
    eidx = jnp.stack([row_p, col_p], axis=1).astype(jnp.int32)       # (E_PAD, 2)

    enc, recon8 = run_fused(maskb, adj, x, eps, eidx, params)
    return recon8[0, :E], enc[:, :L], enc[:, L:2 * L]


# ---------------------------- parameter setup --------------------------------

def init_params(key, input_dim, hidden, latent, dec_ch):
    f32 = jnp.float32
    H = 2
    ks = jax.random.split(key, 16)

    # PyTorch-module-equivalent tensors (deterministic)
    W_gat = jax.random.normal(ks[0], (H * hidden, input_dim), f32) * 0.2   # GATConv.lin
    a_src = jax.random.normal(ks[1], (H, hidden), f32) * 0.2
    a_dst = jax.random.normal(ks[2], (H, hidden), f32) * 0.2
    gat_b = jax.random.normal(ks[3], (hidden,), f32) * 0.05
    W_gcn = jax.random.normal(ks[4], (latent, hidden), f32) * 0.2
    b_gcn = jax.random.normal(ks[5], (latent,), f32) * 0.05
    W_mu = jax.random.normal(ks[6], (latent, latent), f32) * 0.2
    b_mu = jax.random.normal(ks[7], (latent,), f32) * 0.05
    W_lv = jax.random.normal(ks[8], (latent, latent), f32) * 0.2
    b_lv = jax.random.normal(ks[9], (latent,), f32) * 0.05
    W_res = jax.random.normal(ks[10], (latent, latent), f32) * 0.2
    b_res = jax.random.normal(ks[11], (latent,), f32) * 0.05
    W_d1 = jax.random.normal(ks[12], (dec_ch, 2 * latent), f32) * 0.2
    b_d1 = jax.random.normal(ks[13], (dec_ch,), f32) * 0.05
    W_d2 = jax.random.normal(ks[14], (1, dec_ch), f32) * 0.2
    b_d2 = jax.random.normal(ks[15], (1,), f32) * 0.05

    # BatchNorm1d eval with fresh running stats: scale = 1/sqrt(1+eps), shift = 0
    bn_scale = (1.0 + 1e-5) ** -0.5
    bn1_s = jnp.full((hidden,), bn_scale, f32)
    bn1_b = jnp.zeros((hidden,), f32)
    bn2_s = jnp.full((latent,), bn_scale, f32)
    bn2_b = jnp.zeros((latent,), f32)

    Wh0, Wh1 = W_gat[:hidden], W_gat[hidden:]          # (hidden, Din) per head

    # fused per-node projection: [Wh0^T | Wh1^T | Wh0^T a_dst0 | Wh1^T a_dst1] : (Din, 2C+2)
    wproj = jnp.concatenate([Wh0.T, Wh1.T,
                             (a_dst[0] @ Wh0)[:, None],
                             (a_dst[1] @ Wh1)[:, None]], axis=1)
    ws2 = jnp.stack([a_src[0] @ Wh0, a_src[1] @ Wh1], axis=0)          # (2, Din)

    # latent-side fused weights, mu/logvar block zero-padded to ENC_W lanes:
    # [Wmu^T | Wlv^T | 0-pad | Wres^T | Wd1a^T | Wd1b^T] : (L, ENC_W + L + 2*DC)
    ENC_W = _round_up(2 * latent, 128)
    wL = jnp.concatenate([
        W_mu.T, W_lv.T, jnp.zeros((latent, ENC_W - 2 * latent), f32),
        W_res.T, W_d1[:, :latent].T, W_d1[:, latent:].T], axis=1)

    # vector slab: one row per small parameter, lane-padded to a common width
    width = max(ENC_W, hidden, dec_ch, input_dim, 2 * latent)

    def _vrow(v):
        v = jnp.asarray(v, f32).reshape(-1)
        return jnp.pad(v, (0, width - v.shape[0]))

    rows = [
        _vrow(gat_b), _vrow(bn1_s), _vrow(bn1_b),
        _vrow(b_gcn), _vrow(bn2_s), _vrow(bn2_b),
        _vrow(jnp.concatenate([b_mu, b_lv])), _vrow(b_res),
        _vrow(b_d1), _vrow(W_d2[0]), _vrow(b_d2),
        _vrow(ws2[0]), _vrow(ws2[1]),
    ]
    while len(rows) % 8:                                # pad sublane count
        rows.append(jnp.zeros((width,), f32))
    vecs = jnp.stack(rows, axis=0)

    # TODO(synk): tag_embedding / tag_dim_reduction (incorporate_tags) are not used by
    # forward(); not implemented.
    return {"wproj": wproj, "wgcnT": W_gcn.T, "wL": wL, "vecs": vecs}


# ---------------------------------- main -------------------------------------

if __name__ == "__main__":
    N, INPUT_DIM, HIDDEN, LATENT, DEC_CH = 16, 8, 32, 16, 32

    key = jax.random.PRNGKey(0)
    k_x, k_eps, k_params = jax.random.split(key, 3)

    # deterministic small graph: each node i -> (i+1)%N and i -> (i+3)%N  (E = 32)
    src = jnp.concatenate([jnp.arange(N), jnp.arange(N)]).astype(jnp.int32)
    dst = jnp.concatenate([(jnp.arange(N) + 1) % N, (jnp.arange(N) + 3) % N]).astype(jnp.int32)
    edge_index = jnp.stack([src, dst], axis=0)                    # (2, E)

    x = jax.random.normal(k_x, (N, INPUT_DIM), jnp.float32)
    eps = jax.random.normal(k_eps, (N, LATENT), jnp.float32)      # reparameterization noise

    params = init_params(k_params, INPUT_DIM, HIDDEN, LATENT, DEC_CH)

    recon, mu, logvar = gnn_vae_forward(params, x, edge_index, eps, num_nodes=N)
    jax.block_until_ready((recon, mu, logvar))

    assert recon.shape == (edge_index.shape[1],)
    assert mu.shape == (N, LATENT) and logvar.shape == (N, LATENT)
    assert bool(jnp.all(jnp.isfinite(recon))) and bool(jnp.all(jnp.isfinite(mu)))
    assert bool(jnp.all(jnp.isfinite(logvar)))
    print("KERNEL_OK")
</pallas_src>

<mosaic_0001>
module attributes {stable_mosaic.version = 11 : i64} {
  func.func @kernel(%arg0: i32, %arg1: memref<16x16xbf16, #tpu.memory_space<vmem>>, %arg2: memref<16x16xbf16, #tpu.memory_space<vmem>>, %arg3: memref<16x8xf32, #tpu.memory_space<vmem>>, %arg4: memref<16x16xf32, #tpu.memory_space<vmem>>, %arg5: memref<128x2xi32, #tpu.memory_space<vmem>>, %arg6: memref<8x66xf32, #tpu.memory_space<vmem>>, %arg7: memref<32x16xf32, #tpu.memory_space<vmem>>, %arg8: memref<16x208xf32, #tpu.memory_space<vmem>>, %arg9: memref<16x128xf32, #tpu.memory_space<vmem>>, %arg10: memref<16x128xf32, #tpu.memory_space<vmem>>, %arg11: memref<8x128xf32, #tpu.memory_space<vmem>>) attributes {dimension_semantics = [#tpu.dimension_semantics<arbitrary>], iteration_bounds = array<i64: 1>, scalar_prefetch = 0 : i64, scratch_operands = 0 : i64, tpu.core_type = #tpu.core_type<tc>, window_params = [{pipeline_mode = #tpu.pipeline_mode<synchronous>, transform_indices = @transform_0, window_bounds = array<i64: 16, 16>}, {pipeline_mode = #tpu.pipeline_mode<synchronous>, transform_indices = @transform_1, window_bounds = array<i64: 16, 16>}, {pipeline_mode = #tpu.pipeline_mode<synchronous>, transform_indices = @transform_2, window_bounds = array<i64: 16, 8>}, {pipeline_mode = #tpu.pipeline_mode<synchronous>, transform_indices = @transform_3, window_bounds = array<i64: 16, 16>}, {pipeline_mode = #tpu.pipeline_mode<synchronous>, transform_indices = @transform_4, window_bounds = array<i64: 128, 2>}, {pipeline_mode = #tpu.pipeline_mode<synchronous>, transform_indices = @transform_5, window_bounds = array<i64: 8, 66>}, {pipeline_mode = #tpu.pipeline_mode<synchronous>, transform_indices = @transform_6, window_bounds = array<i64: 32, 16>}, {pipeline_mode = #tpu.pipeline_mode<synchronous>, transform_indices = @transform_7, window_bounds = array<i64: 16, 208>}, {pipeline_mode = #tpu.pipeline_mode<synchronous>, transform_indices = @transform_8, window_bounds = array<i64: 16, 128>}, {pipeline_mode = #tpu.pipeline_mode<synchronous>, transform_indices = @transform_9, window_bounds = array<i64: 16, 128>}, {pipeline_mode = #tpu.pipeline_mode<synchronous>, transform_indices = @transform_10, window_bounds = array<i64: 8, 128>}]} {
    %c0 = arith.constant 0 : index
    %c0_0 = arith.constant 0 : index
    %0 = vector.load %arg9[%c0, %c0_0] : memref<16x128xf32, #tpu.memory_space<vmem>>, vector<16x128xf32>
    %1 = vector.extract_strided_slice %0 {offsets = [0, 0], sizes = [1, 32], strides = [1, 1]} : vector<16x128xf32> to vector<1x32xf32>
    %2 = vector.extract_strided_slice %0 {offsets = [1, 0], sizes = [1, 32], strides = [1, 1]} : vector<16x128xf32> to vector<1x32xf32>
    %3 = vector.extract_strided_slice %0 {offsets = [2, 0], sizes = [1, 32], strides = [1, 1]} : vector<16x128xf32> to vector<1x32xf32>
    %4 = vector.extract_strided_slice %0 {offsets = [3, 0], sizes = [1, 16], strides = [1, 1]} : vector<16x128xf32> to vector<1x16xf32>
    %5 = vector.extract_strided_slice %0 {offsets = [4, 0], sizes = [1, 16], strides = [1, 1]} : vector<16x128xf32> to vector<1x16xf32>
    %6 = vector.extract_strided_slice %0 {offsets = [5, 0], sizes = [1, 16], strides = [1, 1]} : vector<16x128xf32> to vector<1x16xf32>
    %7 = vector.extract_strided_slice %0 {offsets = [6, 0], sizes = [1, 128], strides = [1, 1]} : vector<16x128xf32> to vector<1x128xf32>
    %8 = vector.extract_strided_slice %0 {offsets = [7, 0], sizes = [1, 16], strides = [1, 1]} : vector<16x128xf32> to vector<1x16xf32>
    %9 = vector.extract_strided_slice %0 {offsets = [8, 0], sizes = [1, 32], strides = [1, 1]} : vector<16x128xf32> to vector<1x32xf32>
    %10 = vector.extract_strided_slice %0 {offsets = [9, 0], sizes = [1, 32], strides = [1, 1]} : vector<16x128xf32> to vector<1x32xf32>
    %11 = vector.extract_strided_slice %0 {offsets = [10, 0], sizes = [1, 1], strides = [1, 1]} : vector<16x128xf32> to vector<1x1xf32>
    %12 = vector.extract_strided_slice %0 {offsets = [11, 0], sizes = [2, 8], strides = [1, 1]} : vector<16x128xf32> to vector<2x8xf32>
    %c0_1 = arith.constant 0 : index
    %c0_2 = arith.constant 0 : index
    %13 = vector.load %arg3[%c0_1, %c0_2] : memref<16x8xf32, #tpu.memory_space<vmem>>, vector<16x8xf32>
    %c0_3 = arith.constant 0 : index
    %c0_4 = arith.constant 0 : index
    %14 = vector.load %arg6[%c0_3, %c0_4] : memref<8x66xf32, #tpu.memory_space<vmem>>, vector<8x66xf32>
    %cst = arith.constant dense<0.000000e+00> : vector<16x66xf32>
    %15 = tpu.matmul %13, %14, %cst {dimension_numbers = #tpu.dot_dimension_numbers<[1], [0], [0], [1], [0, 0, 1, 1], [], []>} : vector<16x8xf32>, vector<8x66xf32>, vector<16x66xf32> -> vector<16x66xf32>
    %cst_5 = arith.constant dense<0.000000e+00> : vector<2x16xf32>
    %16 = tpu.matmul %12, %13, %cst_5 {dimension_numbers = #tpu.dot_dimension_numbers<[1], [1], [0], [0], [0, 0, 1, 0], [], []>} : vector<2x8xf32>, vector<16x8xf32>, vector<2x16xf32> -> vector<2x16xf32>
    %17 = vector.extract_strided_slice %15 {offsets = [0, 64], sizes = [16, 2], strides = [1, 1]} : vector<16x66xf32> to vector<16x2xf32>
    %c0_6 = arith.constant 0 : index
    %c0_7 = arith.constant 0 : index
    %18 = vector.load %arg1[%c0_6, %c0_7] : memref<16x16xbf16, #tpu.memory_space<vmem>>, vector<16x16xbf16>
    %19 = arith.extf %18 : vector<16x16xbf16> to vector<16x16xf32>
    %20 = vector.extract_strided_slice %17 {offsets = [0, 0], sizes = [16, 1], strides = [1, 1]} : vector<16x2xf32> to vector<16x1xf32>
    %21 = vector.extract_strided_slice %16 {offsets = [0, 0], sizes = [1, 16], strides = [1, 1]} : vector<2x16xf32> to vector<1x16xf32>
    %22 = vector.broadcast %20 : vector<16x1xf32> to vector<16x16xf32>
    %23 = vector.broadcast %21 : vector<1x16xf32> to vector<16x16xf32>
    %24 = arith.addf %22, %23 : vector<16x16xf32>
    %cst_8 = arith.constant 0.000000e+00 : f32
    %25 = vector.broadcast %cst_8 : f32 to vector<16x16xf32>
    %26 = arith.cmpf ogt, %24, %25 : vector<16x16xf32>
    %cst_9 = arith.constant 2.000000e-01 : f32
    %27 = vector.broadcast %cst_9 : f32 to vector<16x16xf32>
    %28 = arith.mulf %27, %24 : vector<16x16xf32>
    %29 = arith.select %26, %24, %28 : vector<16x16xi1>, vector<16x16xf32>
    %30 = arith.addf %29, %19 : vector<16x16xf32>
    %cst_10 = arith.constant dense<0xFF800000> : vector<16xf32>
    %31 = vector.multi_reduction <maximumf>, %30, %cst_10 [1] : vector<16x16xf32> to vector<16xf32>
    %32 = vector.shape_cast %31 : vector<16xf32> to vector<16x1xf32>
    %33 = vector.broadcast %32 : vector<16x1xf32> to vector<16x16xf32>
    %34 = arith.subf %30, %33 : vector<16x16xf32>
    %35 = math.exp %34 : vector<16x16xf32>
    %cst_11 = arith.constant dense<0.000000e+00> : vector<16xf32>
    %36 = vector.multi_reduction <add>, %35, %cst_11 [1] : vector<16x16xf32> to vector<16xf32>
    %37 = vector.shape_cast %36 : vector<16xf32> to vector<16x1xf32>
    %38 = tpu.reciprocal %37 {approx = true} : vector<16x1xf32> -> vector<16x1xf32>
    %39 = vector.broadcast %38 : vector<16x1xf32> to vector<16x16xf32>
    %40 = arith.mulf %35, %39 : vector<16x16xf32>
    %41 = vector.extract_strided_slice %17 {offsets = [0, 1], sizes = [16, 1], strides = [1, 1]} : vector<16x2xf32> to vector<16x1xf32>
    %42 = vector.extract_strided_slice %16 {offsets = [1, 0], sizes = [1, 16], strides = [1, 1]} : vector<2x16xf32> to vector<1x16xf32>
    %43 = vector.broadcast %41 : vector<16x1xf32> to vector<16x16xf32>
    %44 = vector.broadcast %42 : vector<1x16xf32> to vector<16x16xf32>
    %45 = arith.addf %43, %44 : vector<16x16xf32>
    %cst_12 = arith.constant 0.000000e+00 : f32
    %46 = vector.broadcast %cst_12 : f32 to vector<16x16xf32>
    %47 = arith.cmpf ogt, %45, %46 : vector<16x16xf32>
    %cst_13 = arith.constant 2.000000e-01 : f32
    %48 = vector.broadcast %cst_13 : f32 to vector<16x16xf32>
    %49 = arith.mulf %48, %45 : vector<16x16xf32>
    %50 = arith.select %47, %45, %49 : vector<16x16xi1>, vector<16x16xf32>
    %51 = arith.addf %50, %19 : vector<16x16xf32>
    %cst_14 = arith.constant dense<0xFF800000> : vector<16xf32>
    %52 = vector.multi_reduction <maximumf>, %51, %cst_14 [1] : vector<16x16xf32> to vector<16xf32>
    %53 = vector.shape_cast %52 : vector<16xf32> to vector<16x1xf32>
    %54 = vector.broadcast %53 : vector<16x1xf32> to vector<16x16xf32>
    %55 = arith.subf %51, %54 : vector<16x16xf32>
    %56 = math.exp %55 : vector<16x16xf32>
    %cst_15 = arith.constant dense<0.000000e+00> : vector<16xf32>
    %57 = vector.multi_reduction <add>, %56, %cst_15 [1] : vector<16x16xf32> to vector<16xf32>
    %58 = vector.shape_cast %57 : vector<16xf32> to vector<16x1xf32>
    %59 = tpu.reciprocal %58 {approx = true} : vector<16x1xf32> -> vector<16x1xf32>
    %60 = vector.broadcast %59 : vector<16x1xf32> to vector<16x16xf32>
    %61 = arith.mulf %56, %60 : vector<16x16xf32>
    %62 = tpu.concatenate %40, %61 in 1 : vector<16x16xf32>, vector<16x16xf32> -> vector<16x32xf32>
    %63 = vector.extract_strided_slice %15 {offsets = [0, 0], sizes = [16, 32], strides = [1, 1]} : vector<16x66xf32> to vector<16x32xf32>
    %64 = vector.extract_strided_slice %15 {offsets = [0, 32], sizes = [16, 32], strides = [1, 1]} : vector<16x66xf32> to vector<16x32xf32>
    %65 = tpu.concatenate %63, %64 in 0 : vector<16x32xf32>, vector<16x32xf32> -> vector<32x32xf32>
    %66 = arith.truncf %62 : vector<16x32xf32> to vector<16x32xbf16>
    %67 = arith.truncf %65 : vector<32x32xf32> to vector<32x32xbf16>
    %cst_16 = arith.constant dense<0.000000e+00> : vector<16x32xf32>
    %68 = tpu.matmul %66, %67, %cst_16 {dimension_numbers = #tpu.dot_dimension_numbers<[1], [0], [0], [1], [0, 0, 1, 1], [], []>} : vector<16x32xbf16>, vector<32x32xbf16>, vector<16x32xf32> -> vector<16x32xf32>
    %cst_17 = arith.constant 5.000000e-01 : f32
    %69 = vector.broadcast %cst_17 : f32 to vector<16x32xf32>
    %70 = arith.mulf %69, %68 : vector<16x32xf32>
    %71 = vector.broadcast %1 : vector<1x32xf32> to vector<16x32xf32>
    %72 = arith.addf %70, %71 : vector<16x32xf32>
    %cst_18 = arith.constant 0.000000e+00 : f32
    %73 = vector.broadcast %cst_18 : f32 to vector<16x32xf32>
    %74 = arith.maximumf %72, %73 : vector<16x32xf32>
    %75 = vector.broadcast %2 : vector<1x32xf32> to vector<16x32xf32>
    %76 = arith.mulf %74, %75 : vector<16x32xf32>
    %77 = vector.broadcast %3 : vector<1x32xf32> to vector<16x32xf32>
    %78 = arith.addf %76, %77 : vector<16x32xf32>
    %c0_19 = arith.constant 0 : index
    %c0_20 = arith.constant 0 : index
    %79 = vector.load %arg7[%c0_19, %c0_20] : memref<32x16xf32, #tpu.memory_space<vmem>>, vector<32x16xf32>
    %cst_21 = arith.constant dense<0.000000e+00> : vector<16x16xf32>
    %80 = tpu.matmul %78, %79, %cst_21 {dimension_numbers = #tpu.dot_dimension_numbers<[1], [0], [0], [1], [0, 0, 1, 1], [], []>} : vector<16x32xf32>, vector<32x16xf32>, vector<16x16xf32> -> vector<16x16xf32>
    %c0_22 = arith.constant 0 : index
    %c0_23 = arith.constant 0 : index
    %81 = vector.load %arg2[%c0_22, %c0_23] : memref<16x16xbf16, #tpu.memory_space<vmem>>, vector<16x16xbf16>
    %82 = arith.truncf %80 : vector<16x16xf32> to vector<16x16xbf16>
    %cst_24 = arith.constant dense<0.000000e+00> : vector<16x16xf32>
    %83 = tpu.matmul %81, %82, %cst_24 {dimension_numbers = #tpu.dot_dimension_numbers<[1], [0], [0], [1], [0, 0, 1, 1], [], []>} : vector<16x16xbf16>, vector<16x16xbf16>, vector<16x16xf32> -> vector<16x16xf32>
    %84 = vector.broadcast %4 : vector<1x16xf32> to vector<16x16xf32>
    %85 = arith.addf %83, %84 : vector<16x16xf32>
    %cst_25 = arith.constant 0.000000e+00 : f32
    %86 = vector.broadcast %cst_25 : f32 to vector<16x16xf32>
    %87 = arith.maximumf %85, %86 : vector<16x16xf32>
    %88 = vector.broadcast %5 : vector<1x16xf32> to vector<16x16xf32>
    %89 = arith.mulf %87, %88 : vector<16x16xf32>
    %90 = vector.broadcast %6 : vector<1x16xf32> to vector<16x16xf32>
    %91 = arith.addf %89, %90 : vector<16x16xf32>
    %c0_26 = arith.constant 0 : index
    %c0_27 = arith.constant 0 : index
    %92 = vector.load %arg8[%c0_26, %c0_27] : memref<16x208xf32, #tpu.memory_space<vmem>>, vector<16x208xf32>
    %93 = vector.extract_strided_slice %92 {offsets = [0, 0], sizes = [16, 128], strides = [1, 1]} : vector<16x208xf32> to vector<16x128xf32>
    %cst_28 = arith.constant dense<0.000000e+00> : vector<16x128xf32>
    %94 = tpu.matmul %91, %93, %cst_28 {dimension_numbers = #tpu.dot_dimension_numbers<[1], [0], [0], [1], [0, 0, 1, 1], [], []>} : vector<16x16xf32>, vector<16x128xf32>, vector<16x128xf32> -> vector<16x128xf32>
    %95 = vector.broadcast %7 : vector<1x128xf32> to vector<16x128xf32>
    %96 = arith.addf %94, %95 : vector<16x128xf32>
    %c0_29 = arith.constant 0 : index
    %c0_30 = arith.constant 0 : index
    %97 = vector.load %arg10[%c0_29, %c0_30] : memref<16x128xf32, #tpu.memory_space<vmem>>, vector<16x128xf32>
    tpu.vector_store %arg10[%c0_29, %c0_30], %96 {strides = array<i32>} : memref<16x128xf32, #tpu.memory_space<vmem>>, vector<16x128xf32>,
    %98 = vector.extract_strided_slice %96 {offsets = [0, 0], sizes = [16, 16], strides = [1, 1]} : vector<16x128xf32> to vector<16x16xf32>
    %99 = vector.extract_strided_slice %96 {offsets = [0, 16], sizes = [16, 16], strides = [1, 1]} : vector<16x128xf32> to vector<16x16xf32>
    %c0_31 = arith.constant 0 : index
    %c0_32 = arith.constant 0 : index
    %100 = vector.load %arg4[%c0_31, %c0_32] : memref<16x16xf32, #tpu.memory_space<vmem>>, vector<16x16xf32>
    %cst_33 = arith.constant 5.000000e-01 : f32
    %101 = vector.broadcast %cst_33 : f32 to vector<16x16xf32>
    %102 = arith.mulf %101, %99 : vector<16x16xf32>
    %103 = math.exp %102 : vector<16x16xf32>
    %104 = arith.mulf %100, %103 : vector<16x16xf32>
    %105 = arith.addf %98, %104 : vector<16x16xf32>
    %106 = vector.extract_strided_slice %92 {offsets = [0, 128], sizes = [16, 16], strides = [1, 1]} : vector<16x208xf32> to vector<16x16xf32>
    %cst_34 = arith.constant dense<0.000000e+00> : vector<16x16xf32>
    %107 = tpu.matmul %105, %106, %cst_34 {dimension_numbers = #tpu.dot_dimension_numbers<[1], [0], [0], [1], [0, 0, 1, 1], [], []>} : vector<16x16xf32>, vector<16x16xf32>, vector<16x16xf32> -> vector<16x16xf32>
    %108 = vector.broadcast %8 : vector<1x16xf32> to vector<16x16xf32>
    %109 = arith.addf %107, %108 : vector<16x16xf32>
    %110 = vector.extract_strided_slice %92 {offsets = [0, 144], sizes = [16, 64], strides = [1, 1]} : vector<16x208xf32> to vector<16x64xf32>
    %cst_35 = arith.constant dense<0.000000e+00> : vector<16x64xf32>
    %111 = tpu.matmul %109, %110, %cst_35 {dimension_numbers = #tpu.dot_dimension_numbers<[1], [0], [0], [1], [0, 0, 1, 1], [], []>} : vector<16x16xf32>, vector<16x64xf32>, vector<16x64xf32> -> vector<16x64xf32>
    %c0_36 = arith.constant 0 : index
    %c0_37 = arith.constant 0 : index
    %112 = vector.load %arg5[%c0_36, %c0_37] : memref<128x2xi32, #tpu.memory_space<vmem>>, vector<128x2xi32>
    %113 = tpu.iota {dimensions = array<i32: 1>} : vector<128x16xi32>
    %114 = vector.extract_strided_slice %112 {offsets = [0, 0], sizes = [128, 1], strides = [1, 1]} : vector<128x2xi32> to vector<128x1xi32>
    %115 = vector.broadcast %114 : vector<128x1xi32> to vector<128x16xi32>
    %116 = arith.cmpi eq, %113, %115 : vector<128x16xi32>
    %117 = arith.extui %116 : vector<128x16xi1> to vector<128x16xi32>
    %118 = arith.sitofp %117 : vector<128x16xi32> to vector<128x16xf32>
    %119 = vector.extract_strided_slice %112 {offsets = [0, 1], sizes = [128, 1], strides = [1, 1]} : vector<128x2xi32> to vector<128x1xi32>
    %120 = vector.broadcast %119 : vector<128x1xi32> to vector<128x16xi32>
    %121 = arith.cmpi eq, %113, %120 : vector<128x16xi32>
    %122 = arith.extui %121 : vector<128x16xi1> to vector<128x16xi32>
    %123 = arith.sitofp %122 : vector<128x16xi32> to vector<128x16xf32>
    %124 = vector.extract_strided_slice %111 {offsets = [0, 0], sizes = [16, 32], strides = [1, 1]} : vector<16x64xf32> to vector<16x32xf32>
    %cst_38 = arith.constant dense<0.000000e+00> : vector<128x32xf32>
    %125 = tpu.matmul %118, %124, %cst_38 {dimension_numbers = #tpu.dot_dimension_numbers<[1], [0], [0], [1], [0, 0, 1, 1], [], []>} : vector<128x16xf32>, vector<16x32xf32>, vector<128x32xf32> -> vector<128x32xf32>
    %126 = vector.extract_strided_slice %111 {offsets = [0, 32], sizes = [16, 32], strides = [1, 1]} : vector<16x64xf32> to vector<16x32xf32>
    %cst_39 = arith.constant dense<0.000000e+00> : vector<128x32xf32>
    %127 = tpu.matmul %123, %126, %cst_39 {dimension_numbers = #tpu.dot_dimension_numbers<[1], [0], [0], [1], [0, 0, 1, 1], [], []>} : vector<128x16xf32>, vector<16x32xf32>, vector<128x32xf32> -> vector<128x32xf32>
    %128 = arith.addf %125, %127 : vector<128x32xf32>
    %129 = vector.broadcast %9 : vector<1x32xf32> to vector<128x32xf32>
    %130 = arith.addf %128, %129 : vector<128x32xf32>
    %cst_40 = arith.constant 0.000000e+00 : f32
    %131 = vector.broadcast %cst_40 : f32 to vector<128x32xf32>
    %132 = arith.maximumf %130, %131 : vector<128x32xf32>
    %cst_41 = arith.constant dense<0.000000e+00> : vector<1x128xf32>
    %133 = tpu.matmul %10, %132, %cst_41 {dimension_numbers = #tpu.dot_dimension_numbers<[1], [1], [0], [0], [0, 0, 1, 0], [], []>} : vector<1x32xf32>, vector<128x32xf32>, vector<1x128xf32> -> vector<1x128xf32>
    %134 = vector.broadcast %11 : vector<1x1xf32> to vector<1x128xf32>
    %135 = arith.addf %133, %134 : vector<1x128xf32>
    %136 = vector.shape_cast %135 : vector<1x128xf32> to vector<1x128xf32>
    %137 = vector.broadcast %136 : vector<1x128xf32> to vector<8x128xf32>
    %c0_42 = arith.constant 0 : index
    %c0_43 = arith.constant 0 : index
    %138 = vector.load %arg11[%c0_42, %c0_43] : memref<8x128xf32, #tpu.memory_space<vmem>>, vector<8x128xf32>
    tpu.vector_store %arg11[%c0_42, %c0_43], %137 {strides = array<i32>} : memref<8x128xf32, #tpu.memory_space<vmem>>, vector<8x128xf32>,
    return
  }
  func.func @transform_0(%arg0: i32) -> (i32, i32) {
    %c0_i32 = arith.constant 0 : i32
    %c0_i32_0 = arith.constant 0 : i32
    %c0_i32_1 = arith.constant 0 : i32
    return %c0_i32, %c0_i32_0 : i32, i32
  }
  func.func @transform_1(%arg0: i32) -> (i32, i32) {
    %c0_i32 = arith.constant 0 : i32
    %c0_i32_0 = arith.constant 0 : i32
    %c0_i32_1 = arith.constant 0 : i32
    return %c0_i32, %c0_i32_0 : i32, i32
  }
  func.func @transform_2(%arg0: i32) -> (i32, i32) {
    %c0_i32 = arith.constant 0 : i32
    %c0_i32_0 = arith.constant 0 : i32
    %c0_i32_1 = arith.constant 0 : i32
    return %c0_i32, %c0_i32_0 : i32, i32
  }
  func.func @transform_3(%arg0: i32) -> (i32, i32) {
    %c0_i32 = arith.constant 0 : i32
    %c0_i32_0 = arith.constant 0 : i32
    %c0_i32_1 = arith.constant 0 : i32
    return %c0_i32, %c0_i32_0 : i32, i32
  }
  func.func @transform_4(%arg0: i32) -> (i32, i32) {
    %c0_i32 = arith.constant 0 : i32
    %c0_i32_0 = arith.constant 0 : i32
    %c0_i32_1 = arith.constant 0 : i32
    return %c0_i32, %c0_i32_0 : i32, i32
  }
  func.func @transform_5(%arg0: i32) -> (i32, i32) {
    %c0_i32 = arith.constant 0 : i32
    %c0_i32_0 = arith.constant 0 : i32
    %c0_i32_1 = arith.constant 0 : i32
    return %c0_i32, %c0_i32_0 : i32, i32
  }
  func.func @transform_6(%arg0: i32) -> (i32, i32) {
    %c0_i32 = arith.constant 0 : i32
    %c0_i32_0 = arith.constant 0 : i32
    %c0_i32_1 = arith.constant 0 : i32
    return %c0_i32, %c0_i32_0 : i32, i32
  }
  func.func @transform_7(%arg0: i32) -> (i32, i32) {
    %c0_i32 = arith.constant 0 : i32
    %c0_i32_0 = arith.constant 0 : i32
    %c0_i32_1 = arith.constant 0 : i32
    return %c0_i32, %c0_i32_0 : i32, i32
  }
  func.func @transform_8(%arg0: i32) -> (i32, i32) {
    %c0_i32 = arith.constant 0 : i32
    %c0_i32_0 = arith.constant 0 : i32
    %c0_i32_1 = arith.constant 0 : i32
    return %c0_i32, %c0_i32_0 : i32, i32
  }
  func.func @transform_9(%arg0: i32) -> (i32, i32) {
    %c0_i32 = arith.constant 0 : i32
    %c0_i32_0 = arith.constant 0 : i32
    %c0_i32_1 = arith.constant 0 : i32
    return %c0_i32, %c0_i32_0 : i32, i32
  }
  func.func @transform_10(%arg0: i32) -> (i32, i32) {
    %c0_i32 = arith.constant 0 : i32
    %c0_i32_0 = arith.constant 0 : i32
    %c0_i32_1 = arith.constant 0 : i32
    return %c0_i32, %c0_i32_0 : i32, i32
  }
}

</mosaic_0001>

<llo_original>
// kernel: gnn_vae_forward.1
$region0: #{gnn_vae_forward.1}
  #allocation0 [shape = 'u32[]', space=smem, size = 0x4, offset = 0x4, fixed_abs, tag = 'smem constant byte address 0x4 - core index']
  #allocation1 [shape = 'u32[72,128]{1,0:T(1,128)}', space=vmem, size = 0x9000, scoped, tag = 'internal scratch']
  %s0 = inlined_call_operand.vmem [shape: bf16[16,16], index: 0, kind: input, shape index: {}]
  %s1 = inlined_call_operand.vmem [shape: bf16[16,16], index: 1, kind: input, shape index: {}]
  %s2 = inlined_call_operand.vmem [shape: f32[16,8], index: 2, kind: input, shape index: {}]
  %s3 = inlined_call_operand.vmem [shape: f32[16,16], index: 3, kind: input, shape index: {}]
  %s4 = inlined_call_operand.vmem [shape: s32[128,2], index: 4, kind: input, shape index: {}]
  %s5 = inlined_call_operand.vmem [shape: f32[8,66], index: 5, kind: input, shape index: {}]
  %s6 = inlined_call_operand.vmem [shape: f32[32,16], index: 6, kind: input, shape index: {}]
  %s7 = inlined_call_operand.vmem [shape: f32[16,208], index: 7, kind: input, shape index: {}]
  %s8 = inlined_call_operand.vmem [shape: f32[16,128], index: 8, kind: input, shape index: {}]
  %s9 = inlined_call_operand.vmem [shape: f32[16,128], index: 9, kind: output, shape index: {0}]
  %s10 = inlined_call_operand.vmem [shape: f32[8,128], index: 10, kind: output, shape index: {1}]
  %11 = xla_tuple %s9, %s10
  %s12 = sld [smem:[#allocation0]]
  $region54: #{gnn_vae_forward.1} parent=0
    _
  %s14 = ssub.s32 1, %s12
  %s15 = scalar_select 0, %s14, %s12
  // Predicated region
  $region2: #{gnn_vae_forward.1} parent=0 // pred_check
    _
  $region3: #{gnn_vae_forward.1} parent=0 // pred_check_branch
    %17 = sbr.rel (0) target = $region5
  $region4: #{gnn_vae_forward.1} parent=0 // pred_region
    _
  $region5: #{gnn_vae_forward.1} parent=0 // pred_fallthru
    _
  // Predicated region
  $region6: #{gnn_vae_forward.1} parent=0 // pred_check
    _
  $region7: #{gnn_vae_forward.1} parent=0 // pred_check_branch
    %19 = sbr.rel (0) target = $region9
  $region8: #{gnn_vae_forward.1} parent=0 // pred_region
    _
  $region9: #{gnn_vae_forward.1} parent=0 // pred_fallthru
    _
  // Predicated region
  $region10: #{gnn_vae_forward.1} parent=0 // pred_check
    _
  $region11: #{gnn_vae_forward.1} parent=0 // pred_check_branch
    %21 = sbr.rel (0) target = $region13
  $region12: #{gnn_vae_forward.1} parent=0 // pred_region
    _
  $region13: #{gnn_vae_forward.1} parent=0 // pred_fallthru
    _
  // Predicated region
  $region14: #{gnn_vae_forward.1} parent=0 // pred_check
    _
  $region15: #{gnn_vae_forward.1} parent=0 // pred_check_branch
    %23 = sbr.rel (0) target = $region17
  $region16: #{gnn_vae_forward.1} parent=0 // pred_region
    _
  $region17: #{gnn_vae_forward.1} parent=0 // pred_fallthru
    _
  // Predicated region
  $region18: #{gnn_vae_forward.1} parent=0 // pred_check
    _
  $region19: #{gnn_vae_forward.1} parent=0 // pred_check_branch
    %25 = sbr.rel (0) target = $region21
  $region20: #{gnn_vae_forward.1} parent=0 // pred_region
    _
  $region21: #{gnn_vae_forward.1} parent=0 // pred_fallthru
    _
  // Predicated region
  $region22: #{gnn_vae_forward.1} parent=0 // pred_check
    _
  $region23: #{gnn_vae_forward.1} parent=0 // pred_check_branch
    %27 = sbr.rel (0) target = $region25
  $region24: #{gnn_vae_forward.1} parent=0 // pred_region
    _
  $region25: #{gnn_vae_forward.1} parent=0 // pred_fallthru
    _
  // Predicated region
  $region26: #{gnn_vae_forward.1} parent=0 // pred_check
    _
  $region27: #{gnn_vae_forward.1} parent=0 // pred_check_branch
    %29 = sbr.rel (0) target = $region29
  $region28: #{gnn_vae_forward.1} parent=0 // pred_region
    _
  $region29: #{gnn_vae_forward.1} parent=0 // pred_fallthru
    _
  // Predicated region
  $region30: #{gnn_vae_forward.1} parent=0 // pred_check
    _
  $region31: #{gnn_vae_forward.1} parent=0 // pred_check_branch
    %31 = sbr.rel (0) target = $region33
  $region32: #{gnn_vae_forward.1} parent=0 // pred_region
    _
  $region33: #{gnn_vae_forward.1} parent=0 // pred_fallthru
    _
  // Predicated region
  $region34: #{gnn_vae_forward.1} parent=0 // pred_check
    _
  $region35: #{gnn_vae_forward.1} parent=0 // pred_check_branch
    %33 = sbr.rel (0) target = $region37
  $region36: #{gnn_vae_forward.1} parent=0 // pred_region
    _
  $region37: #{gnn_vae_forward.1} parent=0 // pred_fallthru
    _
  %v35 = vld [vmem:[%s8] sm:$0xff]
  %v36 = vld [vmem:[%s8 + $0x8] sm:$0xff]
  %v37 = vld [vmem:[%s2] sm:$0xff]
  %v38 = vld [vmem:[%s2 + $0x8] sm:$0xff]
  %v39 = vld [vmem:[%s5] sm:$0xff]
  %vm40 = vcmask 64512
  %v42 = vsel %vm40, %v37, 0
  %v45 = vsel %vm40, %v38, 0
  %47 = vmatpush.msra.mxu0 0.0
  %48 = vmatpush.msra.mxu0 0.0
  %49 = vmatpush.msra.mxu0 0.0
  %50 = vmatpush.msra.mxu0 0.0
  %51 = vmatpush.msra.mxu0 0.0
  %52 = vmatpush.msra.mxu0 0.0
  %53 = vmatpush.msra.mxu0 0.0
  %54 = vmatpush.msra.mxu0 0.0
  %55 = vmatpush.msra.mxu0 0.0
  %56 = vmatpush.msra.mxu0 0.0
  %57 = vmatpush.msra.mxu0 0.0
  %58 = vmatpush.msra.mxu0 0.0
  %59 = vmatpush.msra.mxu0 0.0
  %60 = vmatpush.msra.mxu0 0.0
  %61 = vmatpush.msra.mxu0 0.0
  %62 = vmatpush.msra.mxu0 %v39
  %63 = vmatmul.f32.gmra.mxu0 %v42
  %v64 = vpop.f32.mrf.mxu0
  %v65 = vadd.f32 0.0, %v64
  %66 = vmatmul.f32.gmra.mxu0 %v45
  %v67 = vpop.f32.mrf.mxu0
  %v68 = vadd.f32 0.0, %v67
  %69 = vdwg.mxu0
  %v71 = vrot.slane %v36, 3
  %v72 = vsel %vm40, %v71, 0
  %74 = vmatpush.xpose.msra.mxu0 0.0
  %75 = vmatpush.xpose.msra.mxu0 0.0
  %76 = vmatpush.xpose.msra.mxu0 0.0
  %77 = vmatpush.xpose.msra.mxu0 0.0
  %78 = vmatpush.xpose.msra.mxu0 0.0
  %79 = vmatpush.xpose.msra.mxu0 0.0
  %80 = vmatpush.xpose.msra.mxu0 0.0
  %81 = vmatpush.xpose.msra.mxu0 0.0
  %82 = vmatpush.xpose.msra.mxu0 0.0
  %83 = vmatpush.xpose.msra.mxu0 0.0
  %84 = vmatpush.xpose.msra.mxu0 0.0
  %85 = vmatpush.xpose.msra.mxu0 0.0
  %86 = vmatpush.xpose.msra.mxu0 0.0
  %87 = vmatpush.xpose.msra.mxu0 0.0
  %88 = vmatpush.xpose.msra.mxu0 %v45
  %89 = vmatpush.xpose.msra.mxu0 %v42
  %90 = vmatmul.f32.gmra.mxu0 %v72
  %v91 = vpop.f32.mrf.mxu0
  %v92 = vadd.f32 0.0, %v91
  %93 = vdwg.mxu0
  %v94 = vld [vmem:[%s0] sm:$0xf]
  %v95 = vld [vmem:[%s0 + $0x4] sm:$0xf]
  %v96 = vunpack.c.l.bf16 %v94
  %v97 = vunpack.c.l.bf16 %v95
  %99 = vset.pattern.permute.xlu0 64
  %100 = vperm.xlu0 %99, %v65
  %v101 = vpop.permute.xlu0 %100
  %104 = vset.pattern.permute.xlu0 64
  %105 = vperm.xlu0 %104, %v68
  %v106 = vpop.permute.xlu0 %105
  %v108 = vperm.slane %v92, 0
  %v109 = vadd.f32 %v101, %v108
  %v110 = vadd.f32 %v106, %v108
  %vm111 = vcmp.gt.f32.partialorder %v109, 0.0
  %vm112 = vcmp.gt.f32.partialorder %v110, 0.0
  %v113 = vmul.f32 %v109, 0.2
  %v114 = vmul.f32 %v110, 0.2
  %v115 = vsel %vm111, %v109, %v113
  %v116 = vsel %vm112, %v110, %v114
  %v117 = vadd.f32 %v115, %v96
  %v118 = vadd.f32 %v116, %v97
  %vm119 = vcmask 130048
  %v120 = vsel %vm119, %v117, -inf
  %121 = vmax.xlane.f32.xlu0 %v120
  %v122 = vpop.xlane.xlu0 %121
  %v123 = vsel %vm119, %v118, -inf
  %124 = vmax.xlane.f32.xlu0 %v123
  %v125 = vpop.xlane.xlu0 %124
  %v126 = vsub.f32 %v117, %v122
  %v127 = vsub.f32 %v118, %v125
  %v128 = vmul.f32 %v126, 1.442695
  %v129 = vpow.pop %v128
  %v130 = vmul.f32 %v127, 1.442695
  %v131 = vpow.pop %v130
  %v132 = vsel %vm119, %v129, 0.0
  %133 = vadd.xlane.f32.xlu0 %v132
  %v134 = vpop.xlane.xlu0 %133
  %v135 = vsel %vm119, %v131, 0.0
  %136 = vadd.xlane.f32.xlu0 %v135
  %v137 = vpop.xlane.xlu0 %136
  %v138 = vrcp.pop %v134
  %v139 = vrcp.pop %v137
  %v140 = vmul.f32 %v129, %v138
  %v141 = vmul.f32 %v131, %v139
  %142 = vset.pattern.permute.xlu0 65
  %143 = vperm.xlu0 %142, %v65
  %v144 = vpop.permute.xlu0 %143
  %146 = vset.pattern.permute.xlu0 65
  %147 = vperm.xlu0 %146, %v68
  %v148 = vpop.permute.xlu0 %147
  %v150 = vperm.slane %v92, 1
  %v151 = vadd.f32 %v144, %v150
  %v152 = vadd.f32 %v148, %v150
  %vm153 = vcmp.gt.f32.partialorder %v151, 0.0
  %vm154 = vcmp.gt.f32.partialorder %v152, 0.0
  %v155 = vmul.f32 %v151, 0.2
  %v156 = vmul.f32 %v152, 0.2
  %v157 = vsel %vm153, %v151, %v155
  %v158 = vsel %vm154, %v152, %v156
  %v159 = vadd.f32 %v157, %v96
  %v160 = vadd.f32 %v158, %v97
  %v161 = vsel %vm119, %v159, -inf
  %162 = vmax.xlane.f32.xlu0 %v161
  %v163 = vpop.xlane.xlu0 %162
  %v164 = vsel %vm119, %v160, -inf
  %165 = vmax.xlane.f32.xlu0 %v164
  %v166 = vpop.xlane.xlu0 %165
  %v167 = vsub.f32 %v159, %v163
  %v168 = vsub.f32 %v160, %v166
  %v169 = vmul.f32 %v167, 1.442695
  %v170 = vpow.pop %v169
  %v171 = vmul.f32 %v168, 1.442695
  %v172 = vpow.pop %v171
  %v173 = vsel %vm119, %v170, 0.0
  %174 = vadd.xlane.f32.xlu0 %v173
  %v175 = vpop.xlane.xlu0 %174
  %v176 = vsel %vm119, %v172, 0.0
  %177 = vadd.xlane.f32.xlu0 %v176
  %v178 = vpop.xlane.xlu0 %177
  %v179 = vrcp.pop %v175
  %v180 = vrcp.pop %v178
  %v181 = vmul.f32 %v170, %v179
  %v182 = vmul.f32 %v172, %v180
  %185 = vrot.lane.b32.xlu0 %v181, 16
  %v186 = vpop.permute.xlu0 %185
  %187 = vrot.lane.b32.xlu0 %v182, 16
  %v188 = vpop.permute.xlu0 %187
  %v191 = vsel %vm119, %v140, %v186
  %v192 = vsel %vm119, %v141, %v188
  %193 = vrot.lane.b32.xlu0 %v65, 96
  %v194 = vpop.permute.xlu0 %193
  %195 = vrot.lane.b32.xlu0 %v68, 96
  %v196 = vpop.permute.xlu0 %195
  %v199 = vpack.c.bf16 %v192, %v191
  %v200 = vpack.c.bf16 %v68, %v65
  %v201 = vpack.c.bf16 %v196, %v194
  %vm202 = vcmask 261120
  %v204 = vsel %vm202, %v199, 0
  %206 = vmatpush.bf16.msra.mxu0 0
  %207 = vmatpush.bf16.msra.mxu0 0
  %208 = vmatpush.bf16.msra.mxu0 0
  %209 = vmatpush.bf16.msra.mxu0 0
  %210 = vmatpush.bf16.msra.mxu0 0
  %211 = vmatpush.bf16.msra.mxu0 0
  %212 = vmatpush.bf16.msra.mxu0 %v201
  %213 = vmatpush.bf16.msra.mxu0 %v200
  %214 = vmatmul.bf16.gmra.mxu0 %v204
  %v215 = vpop.f32.mrf.mxu0
  %v216 = vadd.f32 0.0, %v215
  %v217 = vpop.f32.mrf.mxu0
  %v218 = vadd.f32 0.0, %v217
  %219 = vdwg.mxu0
  %v220 = vmul.f32 %v216, 0.5
  %v221 = vmul.f32 %v218, 0.5
  %v222 = vperm.slane %v35, 0
  %v223 = vadd.f32 %v220, %v222
  %v224 = vadd.f32 %v221, %v222
  %v225 = vmax.f32 %v223, 0.0
  %v226 = vmax.f32 %v224, 0.0
  %v227 = vperm.slane %v35, 1
  %v228 = vmul.f32 %v225, %v227
  %v229 = vmul.f32 %v226, %v227
  %v230 = vperm.slane %v35, 2
  %v231 = vadd.f32 %v228, %v230
  %v232 = vadd.f32 %v229, %v230
  %v233 = vld [vmem:[%s6] sm:$0xff]
  %v234 = vld [vmem:[%s6 + $0x8] sm:$0xff]
  %v235 = vld [vmem:[%s6 + $0x10] sm:$0xff]
  %v236 = vld [vmem:[%s6 + $0x18] sm:$0xff]
  %v238 = vsel %vm202, %v231, 0
  %v241 = vsel %vm202, %v232, 0
  %243 = vmatpush.msra.mxu0 0.0
  %244 = vmatpush.msra.mxu0 0.0
  %245 = vmatpush.msra.mxu0 0.0
  %246 = vmatpush.msra.mxu0 0.0
  %247 = vmatpush.msra.mxu0 0.0
  %248 = vmatpush.msra.mxu0 0.0
  %249 = vmatpush.msra.mxu0 0.0
  %250 = vmatpush.msra.mxu0 0.0
  %251 = vmatpush.msra.mxu0 0.0
  %252 = vmatpush.msra.mxu0 0.0
  %253 = vmatpush.msra.mxu0 0.0
  %254 = vmatpush.msra.mxu0 0.0
  %255 = vmatpush.msra.mxu0 %v236
  %256 = vmatpush.msra.mxu0 %v235
  %257 = vmatpush.msra.mxu0 %v234
  %258 = vmatpush.msra.mxu0 %v233
  %259 = vmatmul.f32.gmra.mxu0 %v238
  %v260 = vpop.f32.mrf.mxu0
  %v261 = vadd.f32 0.0, %v260
  %262 = vmatmul.f32.gmra.mxu0 %v241
  %v263 = vpop.f32.mrf.mxu0
  %v264 = vadd.f32 0.0, %v263
  %265 = vdwg.mxu0
  %v266 = vld [vmem:[%s1] sm:$0xf]
  %v267 = vld [vmem:[%s1 + $0x4] sm:$0xf]
  %v268 = vpack.c.bf16 %v264, %v261
  %v269 = vperm.slane %v35, 3
  %v272 = vunpack.c.l.b16 %v266
  %v273 = vunpack.c.l.b16 %v267
  %v274 = vpack.c.b16 %v273, %v272
  %v276 = vsel %vm119, %v274, 0
  %278 = vmatpush.bf16.msra.mxu0 0
  %279 = vmatpush.bf16.msra.mxu0 0
  %280 = vmatpush.bf16.msra.mxu0 0
  %281 = vmatpush.bf16.msra.mxu0 0
  %282 = vmatpush.bf16.msra.mxu0 0
  %283 = vmatpush.bf16.msra.mxu0 0
  %284 = vmatpush.bf16.msra.mxu0 0
  %285 = vmatpush.bf16.msra.mxu0 %v268
  %286 = vmatmul.bf16.gmra.mxu0 %v276
  %v287 = vpop.f32.mrf.mxu0
  %v288 = vadd.f32 %v269, %v287
  %v289 = vpop.f32.mrf.mxu0
  %v290 = vadd.f32 %v269, %v289
  %291 = vdwg.mxu0
  %v292 = vmax.f32 %v288, 0.0
  %v293 = vmax.f32 %v290, 0.0
  %v294 = vperm.slane %v35, 4
  %v295 = vmul.f32 %v292, %v294
  %v296 = vmul.f32 %v293, %v294
  %v297 = vperm.slane %v35, 5
  %v298 = vadd.f32 %v295, %v297
  %v299 = vadd.f32 %v296, %v297
  %v300 = vld [vmem:[%s7] sm:$0xff]
  %v301 = vld [vmem:[%s7 + $0x8] sm:$0xff]
  %v302 = vld [vmem:[%s7 + $0x10] sm:$0xff]
  %v303 = vld [vmem:[%s7 + $0x18] sm:$0xff]
  %v304 = vperm.slane %v35, 6
  %v306 = vsel %vm119, %v298, 0
  %v309 = vsel %vm119, %v299, 0
  %311 = vmatpush.msra.mxu0 0.0
  %312 = vmatpush.msra.mxu0 0.0
  %313 = vmatpush.msra.mxu0 0.0
  %314 = vmatpush.msra.mxu0 0.0
  %315 = vmatpush.msra.mxu0 0.0
  %316 = vmatpush.msra.mxu0 0.0
  %317 = vmatpush.msra.mxu0 0.0
  %318 = vmatpush.msra.mxu0 0.0
  %319 = vmatpush.msra.mxu0 0.0
  %320 = vmatpush.msra.mxu0 0.0
  %321 = vmatpush.msra.mxu0 0.0
  %322 = vmatpush.msra.mxu0 0.0
  %323 = vmatpush.msra.mxu0 0.0
  %324 = vmatpush.msra.mxu0 0.0
  %325 = vmatpush.msra.mxu0 %v302
  %326 = vmatpush.msra.mxu0 %v300
  %327 = vmatmul.f32.gmra.mxu0 %v306
  %v328 = vpop.f32.mrf.mxu0
  %v329 = vadd.f32 %v304, %v328
  %330 = vmatmul.f32.gmra.mxu0 %v309
  %v331 = vpop.f32.mrf.mxu0
  %v332 = vadd.f32 %v304, %v331
  %333 = vdwg.mxu0
  %334 = vst [vmem:[%s9] sm:$0xff] %v329
  %335 = vst [vmem:[%s9 + $0x8] sm:$0xff] %v332
  %v336 = vld [vmem:[%s3] sm:$0xff]
  %v337 = vld [vmem:[%s3 + $0x8] sm:$0xff]
  %v338 = vmul.f32 %v329, 0.5
  %v339 = vmul.f32 %v332, 0.5
  %v340 = vmul.f32 %v338, 1.442695
  %v341 = vpow.pop %v340
  %v342 = vmul.f32 %v339, 1.442695
  %v343 = vpow.pop %v342
  %346 = vrot.lane.b32.xlu0 %v341, 112
  %v347 = vpop.permute.xlu0 %346
  %348 = vrot.lane.b32.xlu0 %v343, 112
  %v349 = vpop.permute.xlu0 %348
  %v352 = vmul.f32 %v336, %v347
  %v353 = vmul.f32 %v337, %v349
  %v354 = vadd.f32 %v329, %v352
  %v355 = vadd.f32 %v332, %v353
  %v356 = vperm.slane %v35, 7
  %v358 = vsel %vm119, %v354, 0
  %v361 = vsel %vm119, %v355, 0
  %363 = vmatpush.msra.mxu0 0.0
  %364 = vmatpush.msra.mxu0 0.0
  %365 = vmatpush.msra.mxu0 0.0
  %366 = vmatpush.msra.mxu0 0.0
  %367 = vmatpush.msra.mxu0 0.0
  %368 = vmatpush.msra.mxu0 0.0
  %369 = vmatpush.msra.mxu0 0.0
  %370 = vmatpush.msra.mxu0 0.0
  %371 = vmatpush.msra.mxu0 0.0
  %372 = vmatpush.msra.mxu0 0.0
  %373 = vmatpush.msra.mxu0 0.0
  %374 = vmatpush.msra.mxu0 0.0
  %375 = vmatpush.msra.mxu0 0.0
  %376 = vmatpush.msra.mxu0 0.0
  %377 = vmatpush.msra.mxu0 %v303
  %378 = vmatpush.msra.mxu0 %v301
  %379 = vmatmul.f32.gmra.mxu0 %v358
  %v380 = vpop.f32.mrf.mxu0
  %v381 = vadd.f32 %v356, %v380
  %382 = vmatmul.f32.gmra.mxu0 %v361
  %v383 = vpop.f32.mrf.mxu0
  %v384 = vadd.f32 %v356, %v383
  %385 = vdwg.mxu0
  %388 = vrot.lane.b32.xlu0 %v301, 112
  %v389 = vpop.permute.xlu0 %388
  %390 = vrot.lane.b32.xlu0 %v303, 112
  %v391 = vpop.permute.xlu0 %390
  %v395 = vsel %vm119, %v381, 0
  %v398 = vsel %vm119, %v384, 0
  %400 = vmatpush.msra.mxu0 0.0
  %401 = vmatpush.msra.mxu0 0.0
  %402 = vmatpush.msra.mxu0 0.0
  %403 = vmatpush.msra.mxu0 0.0
  %404 = vmatpush.msra.mxu0 0.0
  %405 = vmatpush.msra.mxu0 0.0
  %406 = vmatpush.msra.mxu0 0.0
  %407 = vmatpush.msra.mxu0 0.0
  %408 = vmatpush.msra.mxu0 0.0
  %409 = vmatpush.msra.mxu0 0.0
  %410 = vmatpush.msra.mxu0 0.0
  %411 = vmatpush.msra.mxu0 0.0
  %412 = vmatpush.msra.mxu0 0.0
  %413 = vmatpush.msra.mxu0 0.0
  %414 = vmatpush.msra.mxu0 %v391
  %415 = vmatpush.msra.mxu0 %v389
  %416 = vmatmul.f32.gmra.mxu0 %v395
  %v417 = vpop.f32.mrf.mxu0
  %v418 = vadd.f32 0.0, %v417
  %419 = vmatmul.f32.gmra.mxu0 %v398
  %v420 = vpop.f32.mrf.mxu0
  %v421 = vadd.f32 0.0, %v420
  %422 = vdwg.mxu0
  %v423 = vld [vmem:[%s4] sm:$0xff]
  %v424 = vld [vmem:[%s4 + $0x8] sm:$0xff]
  %v425 = vld [vmem:[%s4 + $0x10] sm:$0xff]
  %v426 = vld [vmem:[%s4 + $0x18] sm:$0xff]
  %v427 = vld [vmem:[%s4 + $0x20] sm:$0xff]
  %v428 = vld [vmem:[%s4 + $0x28] sm:$0xff]
  %v429 = vld [vmem:[%s4 + $0x30] sm:$0xff]
  %v430 = vld [vmem:[%s4 + $0x38] sm:$0xff]
  %v431 = vld [vmem:[%s4 + $0x40] sm:$0xff]
  %v432 = vld [vmem:[%s4 + $0x48] sm:$0xff]
  %v433 = vld [vmem:[%s4 + $0x50] sm:$0xff]
  %v434 = vld [vmem:[%s4 + $0x58] sm:$0xff]
  %v435 = vld [vmem:[%s4 + $0x60] sm:$0xff]
  %v436 = vld [vmem:[%s4 + $0x68] sm:$0xff]
  %v437 = vld [vmem:[%s4 + $0x70] sm:$0xff]
  %v438 = vld [vmem:[%s4 + $0x78] sm:$0xff]
  %v439 = vlaneseq
  %v440 = vand.u32 %v439, 127
  %441 = vset.pattern.permute.xlu0 0
  %442 = vperm.xlu0 %441, %v423
  %v443 = vpop.permute.xlu0 %442
  %444 = vset.pattern.permute.xlu0 0
  %445 = vperm.xlu0 %444, %v424
  %v446 = vpop.permute.xlu0 %445
  %447 = vset.pattern.permute.xlu0 0
  %448 = vperm.xlu0 %447, %v425
  %v449 = vpop.permute.xlu0 %448
  %450 = vset.pattern.permute.xlu0 0
  %451 = vperm.xlu0 %450, %v426
  %v452 = vpop.permute.xlu0 %451
  %453 = vset.pattern.permute.xlu0 0
  %454 = vperm.xlu0 %453, %v427
  %v455 = vpop.permute.xlu0 %454
  %456 = vset.pattern.permute.xlu0 0
  %457 = vperm.xlu0 %456, %v428
  %v458 = vpop.permute.xlu0 %457
  %459 = vset.pattern.permute.xlu0 0
  %460 = vperm.xlu0 %459, %v429
  %v461 = vpop.permute.xlu0 %460
  %462 = vset.pattern.permute.xlu0 0
  %463 = vperm.xlu0 %462, %v430
  %v464 = vpop.permute.xlu0 %463
  %465 = vset.pattern.permute.xlu0 0
  %466 = vperm.xlu0 %465, %v431
  %v467 = vpop.permute.xlu0 %466
  %468 = vset.pattern.permute.xlu0 0
  %469 = vperm.xlu0 %468, %v432
  %v470 = vpop.permute.xlu0 %469
  %471 = vset.pattern.permute.xlu0 0
  %472 = vperm.xlu0 %471, %v433
  %v473 = vpop.permute.xlu0 %472
  %474 = vset.pattern.permute.xlu0 0
  %475 = vperm.xlu0 %474, %v434
  %v476 = vpop.permute.xlu0 %475
  %477 = vset.pattern.permute.xlu0 0
  %478 = vperm.xlu0 %477, %v435
  %v479 = vpop.permute.xlu0 %478
  %480 = vset.pattern.permute.xlu0 0
  %481 = vperm.xlu0 %480, %v436
  %v482 = vpop.permute.xlu0 %481
  %483 = vset.pattern.permute.xlu0 0
  %484 = vperm.xlu0 %483, %v437
  %v485 = vpop.permute.xlu0 %484
  %486 = vset.pattern.permute.xlu0 0
  %487 = vperm.xlu0 %486, %v438
  %v488 = vpop.permute.xlu0 %487
  %vm489 = vcmp.eq.s32.totalorder %v440, %v443
  %vm490 = vcmp.eq.s32.totalorder %v440, %v446
  %vm491 = vcmp.eq.s32.totalorder %v440, %v449
  %vm492 = vcmp.eq.s32.totalorder %v440, %v452
  %vm493 = vcmp.eq.s32.totalorder %v440, %v455
  %vm494 = vcmp.eq.s32.totalorder %v440, %v458
  %vm495 = vcmp.eq.s32.totalorder %v440, %v461
  %vm496 = vcmp.eq.s32.totalorder %v440, %v464
  %vm497 = vcmp.eq.s32.totalorder %v440, %v467
  %vm498 = vcmp.eq.s32.totalorder %v440, %v470
  %vm499 = vcmp.eq.s32.totalorder %v440, %v473
  %vm500 = vcmp.eq.s32.totalorder %v440, %v476
  %vm501 = vcmp.eq.s32.totalorder %v440, %v479
  %vm502 = vcmp.eq.s32.totalorder %v440, %v482
  %vm503 = vcmp.eq.s32.totalorder %v440, %v485
  %vm504 = vcmp.eq.s32.totalorder %v440, %v488
  %v505 = vsel %vm489, 1, 0
  %v506 = vsel %vm490, 1, 0
  %v507 = vsel %vm491, 1, 0
  %v508 = vsel %vm492, 1, 0
  %v509 = vsel %vm493, 1, 0
  %v510 = vsel %vm494, 1, 0
  %v511 = vsel %vm495, 1, 0
  %v512 = vsel %vm496, 1, 0
  %v513 = vsel %vm497, 1, 0
  %v514 = vsel %vm498, 1, 0
  %v515 = vsel %vm499, 1, 0
  %v516 = vsel %vm500, 1, 0
  %v517 = vsel %vm501, 1, 0
  %v518 = vsel %vm502, 1, 0
  %v519 = vsel %vm503, 1, 0
  %v520 = vsel %vm504, 1, 0
  %v521 = vcvt.s32.f32 %v505
  %v522 = vcvt.s32.f32 %v506
  %v523 = vcvt.s32.f32 %v507
  %v524 = vcvt.s32.f32 %v508
  %v525 = vcvt.s32.f32 %v509
  %v526 = vcvt.s32.f32 %v510
  %v527 = vcvt.s32.f32 %v511
  %v528 = vcvt.s32.f32 %v512
  %v529 = vcvt.s32.f32 %v513
  %v530 = vcvt.s32.f32 %v514
  %v531 = vcvt.s32.f32 %v515
  %v532 = vcvt.s32.f32 %v516
  %v533 = vcvt.s32.f32 %v517
  %v534 = vcvt.s32.f32 %v518
  %v535 = vcvt.s32.f32 %v519
  %v536 = vcvt.s32.f32 %v520
  %537 = vset.pattern.permute.xlu0 1
  %538 = vperm.xlu0 %537, %v423
  %v539 = vpop.permute.xlu0 %538
  %540 = vset.pattern.permute.xlu0 1
  %541 = vperm.xlu0 %540, %v424
  %v542 = vpop.permute.xlu0 %541
  %543 = vset.pattern.permute.xlu0 1
  %544 = vperm.xlu0 %543, %v425
  %v545 = vpop.permute.xlu0 %544
  %546 = vset.pattern.permute.xlu0 1
  %547 = vperm.xlu0 %546, %v426
  %v548 = vpop.permute.xlu0 %547
  %549 = vset.pattern.permute.xlu0 1
  %550 = vperm.xlu0 %549, %v427
  %v551 = vpop.permute.xlu0 %550
  %552 = vset.pattern.permute.xlu0 1
  %553 = vperm.xlu0 %552, %v428
  %v554 = vpop.permute.xlu0 %553
  %555 = vset.pattern.permute.xlu0 1
  %556 = vperm.xlu0 %555, %v429
  %v557 = vpop.permute.xlu0 %556
  %558 = vset.pattern.permute.xlu0 1
  %559 = vperm.xlu0 %558, %v430
  %v560 = vpop.permute.xlu0 %559
  %561 = vset.pattern.permute.xlu0 1
  %562 = vperm.xlu0 %561, %v431
  %v563 = vpop.permute.xlu0 %562
  %564 = vset.pattern.permute.xlu0 1
  %565 = vperm.xlu0 %564, %v432
  %v566 = vpop.permute.xlu0 %565
  %567 = vset.pattern.permute.xlu0 1
  %568 = vperm.xlu0 %567, %v433
  %v569 = vpop.permute.xlu0 %568
  %570 = vset.pattern.permute.xlu0 1
  %571 = vperm.xlu0 %570, %v434
  %v572 = vpop.permute.xlu0 %571
  %573 = vset.pattern.permute.xlu0 1
  %574 = vperm.xlu0 %573, %v435
  %v575 = vpop.permute.xlu0 %574
  %576 = vset.pattern.permute.xlu0 1
  %577 = vperm.xlu0 %576, %v436
  %v578 = vpop.permute.xlu0 %577
  %579 = vset.pattern.permute.xlu0 1
  %580 = vperm.xlu0 %579, %v437
  %v581 = vpop.permute.xlu0 %580
  %582 = vset.pattern.permute.xlu0 1
  %583 = vperm.xlu0 %582, %v438
  %v584 = vpop.permute.xlu0 %583
  %vm585 = vcmp.eq.s32.totalorder %v440, %v539
  %vm586 = vcmp.eq.s32.totalorder %v440, %v542
  %vm587 = vcmp.eq.s32.totalorder %v440, %v545
  %vm588 = vcmp.eq.s32.totalorder %v440, %v548
  %vm589 = vcmp.eq.s32.totalorder %v440, %v551
  %vm590 = vcmp.eq.s32.totalorder %v440, %v554
  %vm591 = vcmp.eq.s32.totalorder %v440, %v557
  %vm592 = vcmp.eq.s32.totalorder %v440, %v560
  %vm593 = vcmp.eq.s32.totalorder %v440, %v563
  %vm594 = vcmp.eq.s32.totalorder %v440, %v566
  %vm595 = vcmp.eq.s32.totalorder %v440, %v569
  %vm596 = vcmp.eq.s32.totalorder %v440, %v572
  %vm597 = vcmp.eq.s32.totalorder %v440, %v575
  %vm598 = vcmp.eq.s32.totalorder %v440, %v578
  %vm599 = vcmp.eq.s32.totalorder %v440, %v581
  %vm600 = vcmp.eq.s32.totalorder %v440, %v584
  %v601 = vsel %vm585, 1, 0
  %v602 = vsel %vm586, 1, 0
  %v603 = vsel %vm587, 1, 0
  %v604 = vsel %vm588, 1, 0
  %v605 = vsel %vm589, 1, 0
  %v606 = vsel %vm590, 1, 0
  %v607 = vsel %vm591, 1, 0
  %v608 = vsel %vm592, 1, 0
  %v609 = vsel %vm593, 1, 0
  %v610 = vsel %vm594, 1, 0
  %v611 = vsel %vm595, 1, 0
  %v612 = vsel %vm596, 1, 0
  %v613 = vsel %vm597, 1, 0
  %v614 = vsel %vm598, 1, 0
  %v615 = vsel %vm599, 1, 0
  %v616 = vsel %vm600, 1, 0
  %v617 = vcvt.s32.f32 %v601
  %v618 = vcvt.s32.f32 %v602
  %v619 = vcvt.s32.f32 %v603
  %v620 = vcvt.s32.f32 %v604
  %v621 = vcvt.s32.f32 %v605
  %v622 = vcvt.s32.f32 %v606
  %v623 = vcvt.s32.f32 %v607
  %v624 = vcvt.s32.f32 %v608
  %v625 = vcvt.s32.f32 %v609
  %v626 = vcvt.s32.f32 %v610
  %v627 = vcvt.s32.f32 %v611
  %v628 = vcvt.s32.f32 %v612
  %v629 = vcvt.s32.f32 %v613
  %v630 = vcvt.s32.f32 %v614
  %v631 = vcvt.s32.f32 %v615
  %v632 = vcvt.s32.f32 %v616
  %635 = vrot.lane.b32.xlu0 %v418, 96
  %v636 = vpop.permute.xlu0 %635
  %637 = vrot.lane.b32.xlu0 %v421, 96
  %v638 = vpop.permute.xlu0 %637
  %v642 = vsel %vm119, %v617, 0
  %v645 = vsel %vm119, %v618, 0
  %v648 = vsel %vm119, %v619, 0
  %v651 = vsel %vm119, %v620, 0
  %v654 = vsel %vm119, %v621, 0
  %v657 = vsel %vm119, %v622, 0
  %v660 = vsel %vm119, %v623, 0
  %v663 = vsel %vm119, %v624, 0
  %v666 = vsel %vm119, %v625, 0
  %v669 = vsel %vm119, %v626, 0
  %v672 = vsel %vm119, %v627, 0
  %v675 = vsel %vm119, %v628, 0
  %v678 = vsel %vm119, %v629, 0
  %v681 = vsel %vm119, %v630, 0
  %v684 = vsel %vm119, %v631, 0
  %v687 = vsel %vm119, %v632, 0
  %689 = vmatpush.msra.mxu0 0.0
  %690 = vmatpush.msra.mxu0 0.0
  %691 = vmatpush.msra.mxu0 0.0
  %692 = vmatpush.msra.mxu0 0.0
  %693 = vmatpush.msra.mxu0 0.0
  %694 = vmatpush.msra.mxu0 0.0
  %695 = vmatpush.msra.mxu0 0.0
  %696 = vmatpush.msra.mxu0 0.0
  %697 = vmatpush.msra.mxu0 0.0
  %698 = vmatpush.msra.mxu0 0.0
  %699 = vmatpush.msra.mxu0 0.0
  %700 = vmatpush.msra.mxu0 0.0
  %701 = vmatpush.msra.mxu0 0.0
  %702 = vmatpush.msra.mxu0 0.0
  %703 = vmatpush.msra.mxu0 %v638
  %704 = vmatpush.msra.mxu0 %v636
  %705 = vmatmul.f32.gmra.mxu0 %v642
  %v706 = vpop.f32.mrf.mxu0
  %v707 = vadd.f32 0.0, %v706
  %708 = vmatmul.f32.gmra.mxu0 %v645
  %v709 = vpop.f32.mrf.mxu0
  %v710 = vadd.f32 0.0, %v709
  %711 = vmatmul.f32.gmra.mxu0 %v648
  %v712 = vpop.f32.mrf.mxu0
  %v713 = vadd.f32 0.0, %v712
  %714 = vmatmul.f32.gmra.mxu0 %v651
  %v715 = vpop.f32.mrf.mxu0
  %v716 = vadd.f32 0.0, %v715
  %717 = vmatmul.f32.gmra.mxu0 %v654
  %v718 = vpop.f32.mrf.mxu0
  %v719 = vadd.f32 0.0, %v718
  %720 = vmatmul.f32.gmra.mxu0 %v657
  %v721 = vpop.f32.mrf.mxu0
  %v722 = vadd.f32 0.0, %v721
  %723 = vmatmul.f32.gmra.mxu0 %v660
  %v724 = vpop.f32.mrf.mxu0
  %v725 = vadd.f32 0.0, %v724
  %726 = vmatmul.f32.gmra.mxu0 %v663
  %v727 = vpop.f32.mrf.mxu0
  %v728 = vadd.f32 0.0, %v727
  %729 = vmatmul.f32.gmra.mxu0 %v666
  %v730 = vpop.f32.mrf.mxu0
  %v731 = vadd.f32 0.0, %v730
  %732 = vmatmul.f32.gmra.mxu0 %v669
  %v733 = vpop.f32.mrf.mxu0
  %v734 = vadd.f32 0.0, %v733
  %735 = vmatmul.f32.gmra.mxu0 %v672
  %v736 = vpop.f32.mrf.mxu0
  %v737 = vadd.f32 0.0, %v736
  %738 = vmatmul.f32.gmra.mxu0 %v675
  %v739 = vpop.f32.mrf.mxu0
  %v740 = vadd.f32 0.0, %v739
  %741 = vmatmul.f32.gmra.mxu0 %v678
  %v742 = vpop.f32.mrf.mxu0
  %v743 = vadd.f32 0.0, %v742
  %744 = vmatmul.f32.gmra.mxu0 %v681
  %v745 = vpop.f32.mrf.mxu0
  %v746 = vadd.f32 0.0, %v745
  %747 = vmatmul.f32.gmra.mxu0 %v684
  %v748 = vpop.f32.mrf.mxu0
  %v749 = vadd.f32 0.0, %v748
  %750 = vmatmul.f32.gmra.mxu0 %v687
  %v751 = vpop.f32.mrf.mxu0
  %v752 = vadd.f32 0.0, %v751
  %753 = vdwg.mxu0
  %v755 = vsel %vm119, %v521, 0
  %v758 = vsel %vm119, %v522, 0
  %v761 = vsel %vm119, %v523, 0
  %v764 = vsel %vm119, %v524, 0
  %v767 = vsel %vm119, %v525, 0
  %v770 = vsel %vm119, %v526, 0
  %v773 = vsel %vm119, %v527, 0
  %v776 = vsel %vm119, %v528, 0
  %v779 = vsel %vm119, %v529, 0
  %v782 = vsel %vm119, %v530, 0
  %v785 = vsel %vm119, %v531, 0
  %v788 = vsel %vm119, %v532, 0
  %v791 = vsel %vm119, %v533, 0
  %v794 = vsel %vm119, %v534, 0
  %v797 = vsel %vm119, %v535, 0
  %v800 = vsel %vm119, %v536, 0
  %802 = vmatpush.msra.mxu0 0.0
  %803 = vmatpush.msra.mxu0 0.0
  %804 = vmatpush.msra.mxu0 0.0
  %805 = vmatpush.msra.mxu0 0.0
  %806 = vmatpush.msra.mxu0 0.0
  %807 = vmatpush.msra.mxu0 0.0
  %808 = vmatpush.msra.mxu0 0.0
  %809 = vmatpush.msra.mxu0 0.0
  %810 = vmatpush.msra.mxu0 0.0
  %811 = vmatpush.msra.mxu0 0.0
  %812 = vmatpush.msra.mxu0 0.0
  %813 = vmatpush.msra.mxu0 0.0
  %814 = vmatpush.msra.mxu0 0.0
  %815 = vmatpush.msra.mxu0 0.0
  %816 = vmatpush.msra.mxu0 %v421
  %817 = vmatpush.msra.mxu0 %v418
  %818 = vmatmul.f32.gmra.mxu0 %v755
  %v819 = vpop.f32.mrf.mxu0
  %v820 = vadd.f32 %v707, %v819
  %821 = vmatmul.f32.gmra.mxu0 %v758
  %v822 = vpop.f32.mrf.mxu0
  %v823 = vadd.f32 %v710, %v822
  %824 = vmatmul.f32.gmra.mxu0 %v761
  %v825 = vpop.f32.mrf.mxu0
  %v826 = vadd.f32 %v713, %v825
  %827 = vmatmul.f32.gmra.mxu0 %v764
  %v828 = vpop.f32.mrf.mxu0
  %v829 = vadd.f32 %v716, %v828
  %830 = vmatmul.f32.gmra.mxu0 %v767
  %v831 = vpop.f32.mrf.mxu0
  %v832 = vadd.f32 %v719, %v831
  %833 = vmatmul.f32.gmra.mxu0 %v770
  %v834 = vpop.f32.mrf.mxu0
  %v835 = vadd.f32 %v722, %v834
  %836 = vmatmul.f32.gmra.mxu0 %v773
  %v837 = vpop.f32.mrf.mxu0
  %v838 = vadd.f32 %v725, %v837
  %839 = vmatmul.f32.gmra.mxu0 %v776
  %v840 = vpop.f32.mrf.mxu0
  %v841 = vadd.f32 %v728, %v840
  %842 = vmatmul.f32.gmra.mxu0 %v779
  %v843 = vpop.f32.mrf.mxu0
  %v844 = vadd.f32 %v731, %v843
  %845 = vmatmul.f32.gmra.mxu0 %v782
  %v846 = vpop.f32.mrf.mxu0
  %v847 = vadd.f32 %v734, %v846
  %848 = vmatmul.f32.gmra.mxu0 %v785
  %v849 = vpop.f32.mrf.mxu0
  %v850 = vadd.f32 %v737, %v849
  %851 = vmatmul.f32.gmra.mxu0 %v788
  %v852 = vpop.f32.mrf.mxu0
  %v853 = vadd.f32 %v740, %v852
  %854 = vmatmul.f32.gmra.mxu0 %v791
  %v855 = vpop.f32.mrf.mxu0
  %v856 = vadd.f32 %v743, %v855
  %857 = vmatmul.f32.gmra.mxu0 %v794
  %v858 = vpop.f32.mrf.mxu0
  %v859 = vadd.f32 %v746, %v858
  %860 = vmatmul.f32.gmra.mxu0 %v797
  %v861 = vpop.f32.mrf.mxu0
  %v862 = vadd.f32 %v749, %v861
  %863 = vmatmul.f32.gmra.mxu0 %v800
  %v864 = vpop.f32.mrf.mxu0
  %v865 = vadd.f32 %v752, %v864
  %866 = vdwg.mxu0
  %v867 = vperm.slane %v36, 0
  %v868 = vadd.f32 %v820, %v867
  %v869 = vadd.f32 %v823, %v867
  %v870 = vadd.f32 %v826, %v867
  %v871 = vadd.f32 %v829, %v867
  %v872 = vadd.f32 %v832, %v867
  %v873 = vadd.f32 %v835, %v867
  %v874 = vadd.f32 %v838, %v867
  %v875 = vadd.f32 %v841, %v867
  %v876 = vadd.f32 %v844, %v867
  %v877 = vadd.f32 %v847, %v867
  %v878 = vadd.f32 %v850, %v867
  %v879 = vadd.f32 %v853, %v867
  %v880 = vadd.f32 %v856, %v867
  %v881 = vadd.f32 %v859, %v867
  %v882 = vadd.f32 %v862, %v867
  %v883 = vadd.f32 %v865, %v867
  %v884 = vmax.f32 %v868, 0.0
  %v885 = vmax.f32 %v869, 0.0
  %v886 = vmax.f32 %v870, 0.0
  %v887 = vmax.f32 %v871, 0.0
  %v888 = vmax.f32 %v872, 0.0
  %v889 = vmax.f32 %v873, 0.0
  %v890 = vmax.f32 %v874, 0.0
  %v891 = vmax.f32 %v875, 0.0
  %v892 = vmax.f32 %v876, 0.0
  %v893 = vmax.f32 %v877, 0.0
  %v894 = vmax.f32 %v878, 0.0
  %v895 = vmax.f32 %v879, 0.0
  %v896 = vmax.f32 %v880, 0.0
  %v897 = vmax.f32 %v881, 0.0
  %v898 = vmax.f32 %v882, 0.0
  %v899 = vmax.f32 %v883, 0.0
  %900 = vset.pattern.permute.xlu0 0
  %901 = vperm.xlu0 %900, %v36
  %v902 = vpop.permute.xlu0 %901
  %v903 = vrot.slane %v36, 1
  %v904 = vrot.slane %v902, 2
  %v906 = vsel %vm202, %v903, 0
  %v909 = vsel %vm202, %v884, 0
  %v912 = vsel %vm202, %v885, 0
  %v915 = vsel %vm202, %v886, 0
  %v918 = vsel %vm202, %v887, 0
  %v921 = vsel %vm202, %v888, 0
  %v924 = vsel %vm202, %v889, 0
  %v927 = vsel %vm202, %v890, 0
  %v930 = vsel %vm202, %v891, 0
  %v933 = vsel %vm202, %v892, 0
  %v936 = vsel %vm202, %v893, 0
  %v939 = vsel %vm202, %v894, 0
  %v942 = vsel %vm202, %v895, 0
  %v945 = vsel %vm202, %v896, 0
  %v948 = vsel %vm202, %v897, 0
  %v951 = vsel %vm202, %v898, 0
  %v954 = vsel %vm202, %v899, 0
  %956 = vmatpush.xpose.msra.mxu0 %v954
  %957 = vmatpush.xpose.msra.mxu0 %v951
  %958 = vmatpush.xpose.msra.mxu0 %v948
  %959 = vmatpush.xpose.msra.mxu0 %v945
  %960 = vmatpush.xpose.msra.mxu0 %v942
  %961 = vmatpush.xpose.msra.mxu0 %v939
  %962 = vmatpush.xpose.msra.mxu0 %v936
  %963 = vmatpush.xpose.msra.mxu0 %v933
  %964 = vmatpush.xpose.msra.mxu0 %v930
  %965 = vmatpush.xpose.msra.mxu0 %v927
  %966 = vmatpush.xpose.msra.mxu0 %v924
  %967 = vmatpush.xpose.msra.mxu0 %v921
  %968 = vmatpush.xpose.msra.mxu0 %v918
  %969 = vmatpush.xpose.msra.mxu0 %v915
  %970 = vmatpush.xpose.msra.mxu0 %v912
  %971 = vmatpush.xpose.msra.mxu0 %v909
  %972 = vmatmul.f32.gmra.mxu0 %v906
  %v973 = vpop.f32.mrf.mxu0
  %v974 = vadd.f32 %v904, %v973
  %975 = vdwg.mxu0
  %v976 = vperm.slane %v974, 0
  %977 = vst [vmem:[%s10] sm:$0xff] %v976
  // Predicated region
  $region38: #{gnn_vae_forward.1} parent=0 // pred_check
    _
  $region39: #{gnn_vae_forward.1} parent=0 // pred_check_branch
    %979 = sbr.rel (0) target = $region41
  $region40: #{gnn_vae_forward.1} parent=0 // pred_region
    _
  $region41: #{gnn_vae_forward.1} parent=0 // pred_fallthru
    _
  // Predicated region
  $region42: #{gnn_vae_forward.1} parent=0 // pred_check
    _
  $region43: #{gnn_vae_forward.1} parent=0 // pred_check_branch
    %981 = sbr.rel (0) target = $region45
  $region44: #{gnn_vae_forward.1} parent=0 // pred_region
    _
  $region45: #{gnn_vae_forward.1} parent=0 // pred_fallthru
    _
  // Predicated region
  $region46: #{gnn_vae_forward.1} parent=0 // pred_check
    _
  $region47: #{gnn_vae_forward.1} parent=0 // pred_check_branch
    %983 = sbr.rel (0) target = $region49
  $region48: #{gnn_vae_forward.1} parent=0 // pred_region
    _
  $region49: #{gnn_vae_forward.1} parent=0 // pred_fallthru
    _
  // Predicated region
  $region50: #{gnn_vae_forward.1} parent=0 // pred_check
    _
  $region51: #{gnn_vae_forward.1} parent=0 // pred_check_branch
    %985 = sbr.rel (0) target = $region53
  $region52: #{gnn_vae_forward.1} parent=0 // pred_region
    _
  $region53: #{gnn_vae_forward.1} parent=0 // pred_fallthru
    _

</llo_original>
